<compile_context>
chip_gen: v7x
topology: tpu7x:2x2x1
jax: 0.10.0
libtpu: 0.0.40
codegen_flags: <defaults>
</compile_context>

<pallas_src>
import functools

import jax
import jax.numpy as jnp
from jax import lax
from jax.experimental import pallas as pl
from jax.experimental.pallas import tpu as pltpu


# ----------------------------------------------------------------------------
# Fused Pallas kernel: per-pixel MLP over channels, spatial on the lane axis.
# ----------------------------------------------------------------------------
def _pixel_disc_kernel(x_ref, w1_ref, b1_ref, w2_ref, s2_ref, w3_ref, o_ref,
                       *, negative_slope, use_sigmoid, compute_dtype):
    # x_ref: (1, Cin, ts)   o_ref: (1, 1, ts)   weights: full (VMEM-resident).
    # Matmul operands in bf16 (MXU-native), accumulation + elementwise in f32.
    x = x_ref[0].astype(compute_dtype)                           # (Cin, ts)

    # conv1 (1x1) + bias + LeakyReLU(0.2)
    h1 = jnp.dot(w1_ref[...], x, preferred_element_type=jnp.float32)
    h1 = h1 + b1_ref[...]                                        # (ndf,1) bcast
    h1 = jnp.maximum(h1, negative_slope * h1)

    # conv2 (1x1, no bias) with BatchNorm scale folded into the weights,
    # BN shift applied as a per-channel f32 add, then LeakyReLU(0.2)
    h2 = jnp.dot(w2_ref[...], h1.astype(compute_dtype),
                 preferred_element_type=jnp.float32)
    h2 = h2 + s2_ref[...]                                        # (2ndf,1) bcast
    h2 = jnp.maximum(h2, negative_slope * h2)

    # conv3 (1x1, no bias) -> 1 channel; output row is lane-dense (1, ts)
    y = jnp.dot(w3_ref[...], h2.astype(compute_dtype),
                preferred_element_type=jnp.float32)
    if use_sigmoid:
        y = jax.nn.sigmoid(y)
    o_ref[0] = y.astype(o_ref.dtype)


# ----------------------------------------------------------------------------
# One-time parameter preparation (hoisted out of the forward).
# ----------------------------------------------------------------------------
def prepare_params(conv1_w, conv1_b, conv2_w,
                   bn_gamma, bn_beta, bn_mean, bn_var, conv3_w,
                   eps=1e-5, compute_dtype=jnp.bfloat16):
    """Torch-layout params (OIHW, 1x1) -> flat, BN-folded kernel params.

    Matmul weights are stored in `compute_dtype` (bf16 by default) for the
    MXU; bias / BN-shift stay f32 (added after the f32 accumulation)."""
    ndf = conv1_w.shape[0]
    w1 = conv1_w.reshape(ndf, -1).astype(compute_dtype)           # (ndf, Cin)
    b1 = conv1_b.reshape(ndf, 1).astype(jnp.float32)              # (ndf, 1)
    scale = bn_gamma.astype(jnp.float32) / jnp.sqrt(
        bn_var.astype(jnp.float32) + eps)                         # (2ndf,)
    w2f = (scale[:, None] * conv2_w.reshape(conv2_w.shape[0], ndf).astype(
        jnp.float32)).astype(compute_dtype)                       # (2ndf, ndf)
    s2 = (bn_beta - bn_mean * scale).reshape(-1, 1).astype(jnp.float32)
    w3 = conv3_w.reshape(1, -1).astype(compute_dtype)             # (1, 2ndf)
    return (w1, b1, w2f, s2, w3)


def _pick_tile(s128, ts_max):
    """Largest multiple of 128 that divides s128 and is <= ts_max."""
    if s128 <= ts_max:
        return s128
    q = s128 // 128
    for d in range(ts_max // 128, 0, -1):
        if q % d == 0:
            return 128 * d
    return 128


# ----------------------------------------------------------------------------
# Forward wrapper.
# ----------------------------------------------------------------------------
def pixel_discriminator(x_nchw, params, *, use_sigmoid=False,
                        negative_slope=0.2, ts_max=8192):
    """x: (N, input_nc, H, W) -> (N, 1, H, W)."""
    w1, b1, w2f, s2, w3 = params
    ndf = w1.shape[0]
    compute_dtype = w1.dtype
    n, cin, h, w = x_nchw.shape
    s = h * w
    x3 = x_nchw.reshape(n, cin, s)

    # Lane-align the flattened spatial axis, then pick a tile that divides it
    # exactly (no additional whole-tensor pad beyond the 128 rounding).
    s128 = ((s + 127) // 128) * 128
    ts = _pick_tile(s128, ts_max)
    if s128 != s:
        x3 = jnp.pad(x3, ((0, 0), (0, 0), (0, s128 - s)))

    grid = (n, s128 // ts)
    kernel = functools.partial(_pixel_disc_kernel,
                               negative_slope=negative_slope,
                               use_sigmoid=use_sigmoid,
                               compute_dtype=compute_dtype)

    # Explicit VMEM budget: double-buffered I/O tiles + resident weights +
    # f32 and bf16 copies of the two intermediates; capped for v7x (64 MiB).
    itemsize_in = x_nchw.dtype.itemsize
    w_bytes = (w1.size + w2f.size + w3.size) * jnp.dtype(compute_dtype).itemsize \
        + (b1.size + s2.size) * 4
    io_bytes = 2 * (cin * ts * itemsize_in) + 2 * (ts * itemsize_in)
    inter_bytes = ts * (ndf + 2 * ndf) * (4 + jnp.dtype(compute_dtype).itemsize)
    budget = io_bytes + w_bytes + inter_bytes
    vmem_limit = int(min(48 << 20, max(32 << 20, 2 * budget)))

    out = pl.pallas_call(
        kernel,
        out_shape=jax.ShapeDtypeStruct((n, 1, s128), x_nchw.dtype),
        grid_spec=pltpu.PrefetchScalarGridSpec(
            num_scalar_prefetch=0,
            grid=grid,
            in_specs=[
                pl.BlockSpec((1, cin, ts), lambda i, j: (i, 0, j)),
                pl.BlockSpec(w1.shape, lambda i, j: (0, 0)),
                pl.BlockSpec(b1.shape, lambda i, j: (0, 0)),
                pl.BlockSpec(w2f.shape, lambda i, j: (0, 0)),
                pl.BlockSpec(s2.shape, lambda i, j: (0, 0)),
                pl.BlockSpec(w3.shape, lambda i, j: (0, 0)),
            ],
            out_specs=pl.BlockSpec((1, 1, ts), lambda i, j: (i, 0, j)),
        ),
        compiler_params=pltpu.CompilerParams(
            dimension_semantics=("parallel", "parallel"),
            vmem_limit_bytes=vmem_limit),
    )(x3, w1, b1, w2f, s2, w3)

    return out[:, :, :s].reshape(n, 1, h, w)


# ----------------------------------------------------------------------------
# Pure-JAX reference (mirrors the PyTorch module, eval-mode BatchNorm).
# ----------------------------------------------------------------------------
def reference(x, conv1_w, conv1_b, conv2_w,
              bn_gamma, bn_beta, bn_mean, bn_var, conv3_w,
              eps=1e-5, use_sigmoid=False):
    def conv1x1(inp, wt):
        return lax.conv_general_dilated(
            inp, wt, window_strides=(1, 1), padding=((0, 0), (0, 0)),
            dimension_numbers=("NCHW", "OIHW", "NCHW"),
            precision=lax.Precision.HIGHEST)

    h = conv1x1(x, conv1_w) + conv1_b[None, :, None, None]
    h = jnp.where(h > 0, h, 0.2 * h)
    h = conv1x1(h, conv2_w)
    h = (h - bn_mean[None, :, None, None]) * (
        1.0 / jnp.sqrt(bn_var[None, :, None, None] + eps))
    h = h * bn_gamma[None, :, None, None] + bn_beta[None, :, None, None]
    h = jnp.where(h > 0, h, 0.2 * h)
    h = conv1x1(h, conv3_w)
    if use_sigmoid:
        h = jax.nn.sigmoid(h)
    return h


if __name__ == "__main__":
    # Small, module-consistent shapes: default ndf=64 -> 64/128/1 channels.
    N, input_nc, ndf, H, W = 2, 4, 64, 16, 16

    key = jax.random.PRNGKey(0)
    ks = jax.random.split(key, 9)
    x = jax.random.normal(ks[0], (N, input_nc, H, W), jnp.float32)

    # Deterministic parameters in PyTorch layouts (OIHW 1x1 conv weights).
    conv1_w = 0.1 * jax.random.normal(ks[1], (ndf, input_nc, 1, 1), jnp.float32)
    conv1_b = 0.1 * jax.random.normal(ks[2], (ndf,), jnp.float32)
    conv2_w = 0.1 * jax.random.normal(ks[3], (2 * ndf, ndf, 1, 1), jnp.float32)
    bn_gamma = 1.0 + 0.1 * jax.random.normal(ks[4], (2 * ndf,), jnp.float32)
    bn_beta = 0.1 * jax.random.normal(ks[5], (2 * ndf,), jnp.float32)
    bn_mean = 0.1 * jax.random.normal(ks[6], (2 * ndf,), jnp.float32)
    bn_var = 0.5 + jax.random.uniform(ks[7], (2 * ndf,), jnp.float32)
    conv3_w = 0.1 * jax.random.normal(ks[8], (1, 2 * ndf, 1, 1), jnp.float32)

    params = prepare_params(conv1_w, conv1_b, conv2_w,
                            bn_gamma, bn_beta, bn_mean, bn_var, conv3_w)

    out = jax.block_until_ready(pixel_discriminator(x, params))
    assert out.shape == (N, 1, H, W), out.shape

    ref = jax.block_until_ready(
        reference(x, conv1_w, conv1_b, conv2_w,
                  bn_gamma, bn_beta, bn_mean, bn_var, conv3_w))
    # bf16 matmul operands vs an f32 HIGHEST-precision reference: loosened tol.
    max_err = float(jnp.max(jnp.abs(out - ref)))
    assert jnp.allclose(out, ref, atol=1e-2, rtol=1e-2), max_err

    print("KERNEL_OK")
</pallas_src>

<mosaic_0001>
module attributes {stable_mosaic.version = 11 : i64} {
  func.func @_pixel_disc_kernel(%arg0: i32, %arg1: i32, %arg2: memref<1x4x256xf32, #tpu.memory_space<vmem>>, %arg3: memref<64x4xbf16, #tpu.memory_space<vmem>>, %arg4: memref<64x1xf32, #tpu.memory_space<vmem>>, %arg5: memref<128x64xbf16, #tpu.memory_space<vmem>>, %arg6: memref<128x1xf32, #tpu.memory_space<vmem>>, %arg7: memref<1x128xbf16, #tpu.memory_space<vmem>>, %arg8: memref<1x1x256xf32, #tpu.memory_space<vmem>>) attributes {dimension_semantics = [#tpu.dimension_semantics<parallel>, #tpu.dimension_semantics<parallel>], iteration_bounds = array<i64: 2, 1>, scalar_prefetch = 0 : i64, scratch_operands = 0 : i64, tpu.core_type = #tpu.core_type<tc>, window_params = [{transform_indices = @transform_0, window_bounds = array<i64: 1, 4, 256>}, {pipeline_mode = #tpu.pipeline_mode<synchronous>, transform_indices = @transform_1, window_bounds = array<i64: 64, 4>}, {pipeline_mode = #tpu.pipeline_mode<synchronous>, transform_indices = @transform_2, window_bounds = array<i64: 64, 1>}, {pipeline_mode = #tpu.pipeline_mode<synchronous>, transform_indices = @transform_3, window_bounds = array<i64: 128, 64>}, {pipeline_mode = #tpu.pipeline_mode<synchronous>, transform_indices = @transform_4, window_bounds = array<i64: 128, 1>}, {pipeline_mode = #tpu.pipeline_mode<synchronous>, transform_indices = @transform_5, window_bounds = array<i64: 1, 128>}, {transform_indices = @transform_6, window_bounds = array<i64: 1, 1, 256>}]} {
    %c0 = arith.constant 0 : index
    %c0_0 = arith.constant 0 : index
    %c0_1 = arith.constant 0 : index
    %0 = vector.load %arg2[%c0, %c0_0, %c0_1] : memref<1x4x256xf32, #tpu.memory_space<vmem>>, vector<1x4x256xf32>
    %1 = vector.shape_cast %0 : vector<1x4x256xf32> to vector<4x256xf32>
    %2 = arith.truncf %1 : vector<4x256xf32> to vector<4x256xbf16>
    %c0_2 = arith.constant 0 : index
    %c0_3 = arith.constant 0 : index
    %3 = vector.load %arg3[%c0_2, %c0_3] : memref<64x4xbf16, #tpu.memory_space<vmem>>, vector<64x4xbf16>
    %cst = arith.constant dense<0.000000e+00> : vector<64x256xf32>
    %4 = tpu.matmul %3, %2, %cst {dimension_numbers = #tpu.dot_dimension_numbers<[1], [0], [0], [1], [0, 0, 1, 1], [], []>} : vector<64x4xbf16>, vector<4x256xbf16>, vector<64x256xf32> -> vector<64x256xf32>
    %c0_4 = arith.constant 0 : index
    %c0_5 = arith.constant 0 : index
    %5 = vector.load %arg4[%c0_4, %c0_5] : memref<64x1xf32, #tpu.memory_space<vmem>>, vector<64x1xf32>
    %6 = vector.broadcast %5 : vector<64x1xf32> to vector<64x256xf32>
    %7 = arith.addf %4, %6 : vector<64x256xf32>
    %cst_6 = arith.constant 2.000000e-01 : f32
    %8 = vector.broadcast %cst_6 : f32 to vector<64x256xf32>
    %9 = arith.mulf %8, %7 : vector<64x256xf32>
    %10 = arith.maximumf %7, %9 : vector<64x256xf32>
    %c0_7 = arith.constant 0 : index
    %c0_8 = arith.constant 0 : index
    %11 = vector.load %arg5[%c0_7, %c0_8] : memref<128x64xbf16, #tpu.memory_space<vmem>>, vector<128x64xbf16>
    %12 = arith.truncf %10 : vector<64x256xf32> to vector<64x256xbf16>
    %cst_9 = arith.constant dense<0.000000e+00> : vector<128x256xf32>
    %13 = tpu.matmul %11, %12, %cst_9 {dimension_numbers = #tpu.dot_dimension_numbers<[1], [0], [0], [1], [0, 0, 1, 1], [], []>} : vector<128x64xbf16>, vector<64x256xbf16>, vector<128x256xf32> -> vector<128x256xf32>
    %c0_10 = arith.constant 0 : index
    %c0_11 = arith.constant 0 : index
    %14 = vector.load %arg6[%c0_10, %c0_11] : memref<128x1xf32, #tpu.memory_space<vmem>>, vector<128x1xf32>
    %15 = vector.broadcast %14 : vector<128x1xf32> to vector<128x256xf32>
    %16 = arith.addf %13, %15 : vector<128x256xf32>
    %cst_12 = arith.constant 2.000000e-01 : f32
    %17 = vector.broadcast %cst_12 : f32 to vector<128x256xf32>
    %18 = arith.mulf %17, %16 : vector<128x256xf32>
    %19 = arith.maximumf %16, %18 : vector<128x256xf32>
    %c0_13 = arith.constant 0 : index
    %c0_14 = arith.constant 0 : index
    %20 = vector.load %arg7[%c0_13, %c0_14] : memref<1x128xbf16, #tpu.memory_space<vmem>>, vector<1x128xbf16>
    %21 = arith.truncf %19 : vector<128x256xf32> to vector<128x256xbf16>
    %cst_15 = arith.constant dense<0.000000e+00> : vector<1x256xf32>
    %22 = tpu.matmul %20, %21, %cst_15 {dimension_numbers = #tpu.dot_dimension_numbers<[1], [0], [0], [1], [0, 0, 1, 1], [], []>} : vector<1x128xbf16>, vector<128x256xbf16>, vector<1x256xf32> -> vector<1x256xf32>
    %c0_16 = arith.constant 0 : index
    %c0_17 = arith.constant 0 : index
    %c0_18 = arith.constant 0 : index
    %23 = vector.load %arg8[%c0_16, %c0_17, %c0_18] : memref<1x1x256xf32, #tpu.memory_space<vmem>>, vector<1x1x256xf32>
    %24 = vector.shape_cast %23 : vector<1x1x256xf32> to vector<1x256xf32>
    %25 = vector.shape_cast %22 : vector<1x256xf32> to vector<1x1x256xf32>
    tpu.vector_store %arg8[%c0_16, %c0_17, %c0_18], %25 {strides = array<i32>} : memref<1x1x256xf32, #tpu.memory_space<vmem>>, vector<1x1x256xf32>,
    return
  }
  func.func @transform_0(%arg0: i32, %arg1: i32) -> (i32, i32, i32) {
    %c0_i32 = arith.constant 0 : i32
    %c0_i32_0 = arith.constant 0 : i32
    return %arg0, %c0_i32, %arg1 : i32, i32, i32
  }
  func.func @transform_1(%arg0: i32, %arg1: i32) -> (i32, i32) {
    %c0_i32 = arith.constant 0 : i32
    %c0_i32_0 = arith.constant 0 : i32
    %c0_i32_1 = arith.constant 0 : i32
    return %c0_i32, %c0_i32_0 : i32, i32
  }
  func.func @transform_2(%arg0: i32, %arg1: i32) -> (i32, i32) {
    %c0_i32 = arith.constant 0 : i32
    %c0_i32_0 = arith.constant 0 : i32
    %c0_i32_1 = arith.constant 0 : i32
    return %c0_i32, %c0_i32_0 : i32, i32
  }
  func.func @transform_3(%arg0: i32, %arg1: i32) -> (i32, i32) {
    %c0_i32 = arith.constant 0 : i32
    %c0_i32_0 = arith.constant 0 : i32
    %c0_i32_1 = arith.constant 0 : i32
    return %c0_i32, %c0_i32_0 : i32, i32
  }
  func.func @transform_4(%arg0: i32, %arg1: i32) -> (i32, i32) {
    %c0_i32 = arith.constant 0 : i32
    %c0_i32_0 = arith.constant 0 : i32
    %c0_i32_1 = arith.constant 0 : i32
    return %c0_i32, %c0_i32_0 : i32, i32
  }
  func.func @transform_5(%arg0: i32, %arg1: i32) -> (i32, i32) {
    %c0_i32 = arith.constant 0 : i32
    %c0_i32_0 = arith.constant 0 : i32
    %c0_i32_1 = arith.constant 0 : i32
    return %c0_i32, %c0_i32_0 : i32, i32
  }
  func.func @transform_6(%arg0: i32, %arg1: i32) -> (i32, i32, i32) {
    %c0_i32 = arith.constant 0 : i32
    %c0_i32_0 = arith.constant 0 : i32
    return %arg0, %c0_i32, %arg1 : i32, i32, i32
  }
}

</mosaic_0001>

<llo_original>
// kernel: tpu_custom_call.1
$region0: #{tpu_custom_call.1}
  #allocation0 [shape = 'u32[]', space=smem, size = 0x4, offset = 0x4, fixed_abs, tag = 'smem constant byte address 0x4 - core index']
  #allocation1 [shape = 'u32[144,128]{1,0:T(1,128)}', space=vmem, size = 0x12000, scoped, tag = 'internal scratch']
  %s0 = inlined_call_operand.vmem [shape: f32[2,4,256], index: 0, kind: input, shape index: {}]
  %s1 = inlined_call_operand.vmem [shape: bf16[64,4], index: 1, kind: input, shape index: {}]
  %s2 = inlined_call_operand.vmem [shape: f32[64,1], index: 2, kind: input, shape index: {}]
  %s3 = inlined_call_operand.vmem [shape: bf16[128,64], index: 3, kind: input, shape index: {}]
  %s4 = inlined_call_operand.vmem [shape: f32[128,1], index: 4, kind: input, shape index: {}]
  %s5 = inlined_call_operand.vmem [shape: bf16[1,128], index: 5, kind: input, shape index: {}]
  %s6 = inlined_call_operand.hbm [shape: f32[2,1,256], index: 6, kind: output, shape index: {}]
  %s7 = sld [smem:[#allocation0]]
  $region57: #{tpu_custom_call.1} parent=0
    _
  %s9 = ssub.s32 1, %s7
  %s10 = scalar_select 0, %s9, %s7
  $region1: #{tpu_custom_call.1} parent=0
    #allocation2 [shape = 'u8[2048]{0}', space=vmem, size = 0x800, scoped, tag = 'output window, operand 0']
    #allocation3 [shape = 's32[2]{0}', space=sflag, size = 0x8, scoped, tag = 'scoped memory for tpu_custom_call.1']
    %11 = vsyncpa [#allocation3], 0
    %s12 = scalar_lea.sflag [#allocation3], 1
    %13 = vsyncpa %s12, 0
    loop: start=0, step=1, limit=4
    $region2: #{tpu_custom_call.1} parent=1 // loop_pre_header
      _
    $region3: #{tpu_custom_call.1} parent=1 // loop_header
      %s15 = sphi 0, %s19
      %p16 = scmp.ge.s32.totalorder %s15, 4
      %s22 = sphi 0, %s34
      %s23 = sphi 0, %s30
      %s24 = sphi 0, %s22
      %s25 = sphi 0, %s23
      %s26 = sphi 0, %s24
      %s27 = sphi 0, %s25
      %s39 = sphi 0, %s41
      %s42 = sphi 0, %s39
      %s43 = sphi 0, %s42
      %s59 = sphi 0, %s43
      %s63 = sphi 0, %s63
      %s65 = sphi 0, %s63
      %s66 = sphi 0, %s65
      %s80 = sphi 0, %s66
      %s84 = sphi 0, %s84
      %s86 = sphi 0, %s84
      %s87 = sphi 0, %s86
      %s101 = sphi 0, %s87
      %s105 = sphi 0, %s105
      %s107 = sphi 0, %s105
      %s108 = sphi 0, %s107
      %s122 = sphi 0, %s108
      %s126 = sphi 0, %s126
      %s128 = sphi 0, %s126
      %s129 = sphi 0, %s128
      %s143 = sphi 0, %s129
      %s147 = sphi 0, %s147
      %s149 = sphi 0, %s147
      %s150 = sphi 0, %s149
      %s164 = sphi 0, %s150
      %s172 = sphi 0, %s174
      %s175 = sphi 0, %s172
      %s176 = sphi 0, %s175
      %s192 = sphi 0, %s176
    $region4: #{tpu_custom_call.1} parent=1 // loop_header_branch
      %18 = sbr.rel (%p16) target = $region8
    $region5: #{tpu_custom_call.1} parent=1 // loop_body
      %s20 = ssub.s32 %s15, 1
      %s21 = ssub.s32 %s15, 2
      %s28 = sadd.s32 1, %s23
      %p29 = scmp.ge.s32.totalorder %s28, 1
      %s30 = scalar_select %p29, 0, %s28
      %s31 = sadd.s32 1, %s22
      %s32 = scalar_select %p29, %s31, %s22
      %p33 = scmp.ge.s32.totalorder %s32, 2
      %s34 = scalar_select %p33, 0, %s32
      %s35 = ssub.s32 %s22, %s34
      %s36 = ssub.s32 %s23, %s30
      %s37 = sor.u32 %s35, %s36
      %p38 = scmp.eq.s32.totalorder %s37, 0
      %s40 = sadd.s32 %s39, 1
      %s41 = scalar_select %p38, %s39, %s40
      %p44 = pneg %p38
      %p45 = scmp.eq.s32.totalorder %s15, 1
      %p46 = por %p44, %p45
      %p47 = scmp.ne.s32.totalorder %s39, %s42
      %p48 = scmp.eq.s32.totalorder %s15, 0
      %p49 = por %p47, %p48
      %p50 = scmp.ne.s32.totalorder %s39, %s42
      %p51 = scmp.eq.s32.totalorder %s20, 1
      %p52 = por %p50, %p51
      %p53 = scmp.ne.s32.totalorder %s42, %s43
      %p54 = scmp.eq.s32.totalorder %s20, 0
      %p55 = por %p53, %p54
      %p56 = scmp.ne.s32.totalorder %s42, %s43
      %p57 = scmp.eq.s32.totalorder %s21, 1
      %p58 = por %p56, %p57
      %p60 = scmp.ne.s32.totalorder %s43, %s59
      %p61 = scmp.eq.s32.totalorder %s21, 0
      %p62 = por %p60, %p61
      %s64 = sadd.s32 %s63, 1
      %p67 = scmp.eq.s32.totalorder %s15, 1
      %p68 = scmp.ne.s32.totalorder %s63, %s65
      %p69 = scmp.eq.s32.totalorder %s15, 0
      %p70 = por %p68, %p69
      %p71 = scmp.ne.s32.totalorder %s63, %s65
      %p72 = scmp.eq.s32.totalorder %s20, 1
      %p73 = por %p71, %p72
      %p74 = scmp.ne.s32.totalorder %s65, %s66
      %p75 = scmp.eq.s32.totalorder %s20, 0
      %p76 = por %p74, %p75
      %p77 = scmp.ne.s32.totalorder %s65, %s66
      %p78 = scmp.eq.s32.totalorder %s21, 1
      %p79 = por %p77, %p78
      %p81 = scmp.ne.s32.totalorder %s66, %s80
      %p82 = scmp.eq.s32.totalorder %s21, 0
      %p83 = por %p81, %p82
      %s85 = sadd.s32 %s84, 1
      %p88 = scmp.eq.s32.totalorder %s15, 1
      %p89 = scmp.ne.s32.totalorder %s84, %s86
      %p90 = scmp.eq.s32.totalorder %s15, 0
      %p91 = por %p89, %p90
      %p92 = scmp.ne.s32.totalorder %s84, %s86
      %p93 = scmp.eq.s32.totalorder %s20, 1
      %p94 = por %p92, %p93
      %p95 = scmp.ne.s32.totalorder %s86, %s87
      %p96 = scmp.eq.s32.totalorder %s20, 0
      %p97 = por %p95, %p96
      %p98 = scmp.ne.s32.totalorder %s86, %s87
      %p99 = scmp.eq.s32.totalorder %s21, 1
      %p100 = por %p98, %p99
      %p102 = scmp.ne.s32.totalorder %s87, %s101
      %p103 = scmp.eq.s32.totalorder %s21, 0
      %p104 = por %p102, %p103
      %s106 = sadd.s32 %s105, 1
      %p109 = scmp.eq.s32.totalorder %s15, 1
      %p110 = scmp.ne.s32.totalorder %s105, %s107
      %p111 = scmp.eq.s32.totalorder %s15, 0
      %p112 = por %p110, %p111
      %p113 = scmp.ne.s32.totalorder %s105, %s107
      %p114 = scmp.eq.s32.totalorder %s20, 1
      %p115 = por %p113, %p114
      %p116 = scmp.ne.s32.totalorder %s107, %s108
      %p117 = scmp.eq.s32.totalorder %s20, 0
      %p118 = por %p116, %p117
      %p119 = scmp.ne.s32.totalorder %s107, %s108
      %p120 = scmp.eq.s32.totalorder %s21, 1
      %p121 = por %p119, %p120
      %p123 = scmp.ne.s32.totalorder %s108, %s122
      %p124 = scmp.eq.s32.totalorder %s21, 0
      %p125 = por %p123, %p124
      %s127 = sadd.s32 %s126, 1
      %p130 = scmp.eq.s32.totalorder %s15, 1
      %p131 = scmp.ne.s32.totalorder %s126, %s128
      %p132 = scmp.eq.s32.totalorder %s15, 0
      %p133 = por %p131, %p132
      %p134 = scmp.ne.s32.totalorder %s126, %s128
      %p135 = scmp.eq.s32.totalorder %s20, 1
      %p136 = por %p134, %p135
      %p137 = scmp.ne.s32.totalorder %s128, %s129
      %p138 = scmp.eq.s32.totalorder %s20, 0
      %p139 = por %p137, %p138
      %p140 = scmp.ne.s32.totalorder %s128, %s129
      %p141 = scmp.eq.s32.totalorder %s21, 1
      %p142 = por %p140, %p141
      %p144 = scmp.ne.s32.totalorder %s129, %s143
      %p145 = scmp.eq.s32.totalorder %s21, 0
      %p146 = por %p144, %p145
      %s148 = sadd.s32 %s147, 1
      %p151 = scmp.eq.s32.totalorder %s15, 1
      %p152 = scmp.ne.s32.totalorder %s147, %s149
      %p153 = scmp.eq.s32.totalorder %s15, 0
      %p154 = por %p152, %p153
      %p155 = scmp.ne.s32.totalorder %s147, %s149
      %p156 = scmp.eq.s32.totalorder %s20, 1
      %p157 = por %p155, %p156
      %p158 = scmp.ne.s32.totalorder %s149, %s150
      %p159 = scmp.eq.s32.totalorder %s20, 0
      %p160 = por %p158, %p159
      %p161 = scmp.ne.s32.totalorder %s149, %s150
      %p162 = scmp.eq.s32.totalorder %s21, 1
      %p163 = por %p161, %p162
      %p165 = scmp.ne.s32.totalorder %s150, %s164
      %p166 = scmp.eq.s32.totalorder %s21, 0
      %p167 = por %p165, %p166
      %s168 = ssub.s32 %s22, %s34
      %s169 = ssub.s32 %s23, %s30
      %s170 = sor.u32 %s168, %s169
      %p171 = scmp.eq.s32.totalorder %s170, 0
      %s173 = sadd.s32 %s172, 1
      %s174 = scalar_select %p171, %s172, %s173
      %p177 = pneg %p171
      %p178 = scmp.eq.s32.totalorder %s15, 1
      %p179 = por %p177, %p178
      %p180 = scmp.ne.s32.totalorder %s172, %s175
      %p181 = scmp.eq.s32.totalorder %s15, 0
      %p182 = por %p180, %p181
      %p183 = scmp.ne.s32.totalorder %s172, %s175
      %p184 = scmp.eq.s32.totalorder %s20, 1
      %p185 = por %p183, %p184
      %p186 = scmp.ne.s32.totalorder %s175, %s176
      %p187 = scmp.eq.s32.totalorder %s20, 0
      %p188 = por %p186, %p187
      %p189 = scmp.ne.s32.totalorder %s175, %s176
      %p190 = scmp.eq.s32.totalorder %s21, 1
      %p191 = por %p189, %p190
      %p193 = scmp.ne.s32.totalorder %s176, %s192
      %p194 = scmp.eq.s32.totalorder %s21, 0
      %p195 = por %p193, %p194
      %p196 = scmp.le.s32.totalorder 1, %s15
      %p197 = scmp.lt.s32.totalorder %s15, 3
      %p198 = pnand %p196, %p197
      %p199 = pneg %p198
      // Predicated region
      $region9: #{tpu_custom_call.1} parent=5 // pred_check
        _
      $region10: #{tpu_custom_call.1} parent=5 // pred_check_branch
        %201 = sbr.rel (%p198) target = $region12
      $region11: #{tpu_custom_call.1} parent=5 // pred_region
        %s202 = ssub.s32 %s15, 1
        // Predicated region
        $region13: #{tpu_custom_call.1} parent=11 // pred_check
          %p203 = pneg %p76
        $region14: #{tpu_custom_call.1} parent=11 // pred_check_branch
          %205 = sbr.rel (%p203) target = $region16
        $region15: #{tpu_custom_call.1} parent=11 // pred_region
          _
        $region16: #{tpu_custom_call.1} parent=11 // pred_fallthru
          _
        // Predicated region
        $region17: #{tpu_custom_call.1} parent=11 // pred_check
          %p206 = pneg %p97
        $region18: #{tpu_custom_call.1} parent=11 // pred_check_branch
          %208 = sbr.rel (%p206) target = $region20
        $region19: #{tpu_custom_call.1} parent=11 // pred_region
          _
        $region20: #{tpu_custom_call.1} parent=11 // pred_fallthru
          _
        // Predicated region
        $region21: #{tpu_custom_call.1} parent=11 // pred_check
          %p209 = pneg %p118
        $region22: #{tpu_custom_call.1} parent=11 // pred_check_branch
          %211 = sbr.rel (%p209) target = $region24
        $region23: #{tpu_custom_call.1} parent=11 // pred_region
          _
        $region24: #{tpu_custom_call.1} parent=11 // pred_fallthru
          _
        // Predicated region
        $region25: #{tpu_custom_call.1} parent=11 // pred_check
          %p212 = pneg %p139
        $region26: #{tpu_custom_call.1} parent=11 // pred_check_branch
          %214 = sbr.rel (%p212) target = $region28
        $region27: #{tpu_custom_call.1} parent=11 // pred_region
          _
        $region28: #{tpu_custom_call.1} parent=11 // pred_fallthru
          _
        // Predicated region
        $region29: #{tpu_custom_call.1} parent=11 // pred_check
          %p215 = pneg %p160
        $region30: #{tpu_custom_call.1} parent=11 // pred_check_branch
          %217 = sbr.rel (%p215) target = $region32
        $region31: #{tpu_custom_call.1} parent=11 // pred_region
          _
        $region32: #{tpu_custom_call.1} parent=11 // pred_fallthru
          _
      $region12: #{tpu_custom_call.1} parent=5 // pred_fallthru
        _
      %p218 = scmp.lt.s32.totalorder %s15, 2
      // Predicated region
      $region33: #{tpu_custom_call.1} parent=5 // pred_check
        %p219 = pneg %p218
      $region34: #{tpu_custom_call.1} parent=5 // pred_check_branch
        %221 = sbr.rel (%p219) target = $region36
      $region35: #{tpu_custom_call.1} parent=5 // pred_region
        // Predicated region
        $region37: #{tpu_custom_call.1} parent=35 // pred_check
          %p222 = pneg %p49
        $region38: #{tpu_custom_call.1} parent=35 // pred_check_branch
          %224 = sbr.rel (%p222) target = $region40
        $region39: #{tpu_custom_call.1} parent=35 // pred_region
          %s225 = smul.u32 2, %s23
          %p226 = scmp.lt.s32.totalorder %s22, 1
          %s227 = scalar_select %p226, %s22, 1
          %p228 = scmp.lt.s32.totalorder %s225, 1
          %s229 = scalar_select %p228, %s225, 1
          %s230 = smul.addr %s227, 2
          %s231 = sadd.s32 %s229, %s230
          %s232 = smul.addr %s231, 4
          %s233 = scalar_lea.vmem %s0, %s232
          %s234 = smul.u32 2, %s23
        $region40: #{tpu_custom_call.1} parent=35 // pred_fallthru
          _
      $region36: #{tpu_custom_call.1} parent=5 // pred_fallthru
        _
      %p235 = scmp.le.s32.totalorder 1, %s15
      %p236 = scmp.lt.s32.totalorder %s15, 3
      %p237 = pnand %p235, %p236
      %p238 = pneg %p237
      // Predicated region
      $region41: #{tpu_custom_call.1} parent=5 // pred_check
        _
      $region42: #{tpu_custom_call.1} parent=5 // pred_check_branch
        %240 = sbr.rel (%p237) target = $region44
      $region43: #{tpu_custom_call.1} parent=5 // pred_region
        %s241 = ssub.s32 %s15, 1
        %s242 = smul.u32 2, %s25
        %p243 = scmp.lt.s32.totalorder %s24, 1
        %s244 = scalar_select %p243, %s24, 1
        %p245 = scmp.lt.s32.totalorder %s242, 1
        %s246 = scalar_select %p245, %s242, 1
        %s247 = smul.addr %s244, 2
        %s248 = sadd.s32 %s246, %s247
        %s249 = smul.addr %s248, 4
        %s250 = scalar_lea.vmem %s0, %s249
        %p251 = pneg %p55
        %p252 = pneg %p52
        %p253 = pneg %p76
        %p254 = pneg %p73
        %p255 = pneg %p97
        %p256 = pneg %p94
        %p257 = pneg %p118
        %p258 = pneg %p115
        %p259 = pneg %p139
        %p260 = pneg %p136
        %p261 = pneg %p160
        %p262 = pneg %p157
        %p263 = pneg %p188
        %p264 = pneg %p185
        %s265 = sand.u32 %s175, 1
        %s266 = scalar_lea.sflag [#allocation3], %s265
        %s267 = sand.u32 %s175, 1
        %s268 = smul.addr %s267, 2
        %s269 = scalar_lea.vmem [#allocation2], %s268
        %s270 = smul.u32 2, %s25
        %p271 = scmp.lt.s32.totalorder %s24, 1
        %s272 = scalar_select %p271, %s24, 1
        %p273 = scmp.lt.s32.totalorder %s270, 1
        %s274 = scalar_select %p273, %s270, 1
        %s275 = smul.addr %s272, 2
        %s276 = sadd.s32 %s274, %s275
        %s277 = smul.addr %s276, 4
        %s278 = scalar_lea.vmem %s0, %s277
        %s279 = smul.u32 2, %s25
        %s280 = smul.u32 2, %s25
        %v282 = vld [vmem:[%s278] sm:$0xff]
        %v284 = vcombine.high %v282, %v282
        %v286 = vpack.c.bf16 %v282, %v282
        %v287 = vpack.c.bf16 %v284, %v284
        %v288 = vld [vmem:[%s1] sm:$0xf]
        %v289 = vld [vmem:[%s1 + $0x4] sm:$0xf]
        %v290 = vld [vmem:[%s1 + $0x8] sm:$0xf]
        %v291 = vld [vmem:[%s1 + $0xc] sm:$0xf]
        %v292 = vld [vmem:[%s1 + $0x10] sm:$0xf]
        %v293 = vld [vmem:[%s1 + $0x14] sm:$0xf]
        %v294 = vld [vmem:[%s1 + $0x18] sm:$0xf]
        %v295 = vld [vmem:[%s1 + $0x1c] sm:$0xf]
        %v296 = vld [vmem:[%s2] sm:$0xff]
        %v297 = vld [vmem:[%s2 + $0x8] sm:$0xff]
        %v298 = vld [vmem:[%s2 + $0x10] sm:$0xff]
        %v299 = vld [vmem:[%s2 + $0x18] sm:$0xff]
        %v300 = vld [vmem:[%s2 + $0x20] sm:$0xff]
        %v301 = vld [vmem:[%s2 + $0x28] sm:$0xff]
        %v302 = vld [vmem:[%s2 + $0x30] sm:$0xff]
        %v303 = vld [vmem:[%s2 + $0x38] sm:$0xff]
        %305 = vset.pattern.permute.xlu0 0
        %306 = vperm.xlu0 %305, %v296
        %v307 = vpop.permute.xlu0 %306
        %310 = vset.pattern.permute.xlu0 0
        %311 = vperm.xlu0 %310, %v297
        %v312 = vpop.permute.xlu0 %311
        %315 = vset.pattern.permute.xlu0 0
        %316 = vperm.xlu0 %315, %v298
        %v317 = vpop.permute.xlu0 %316
        %320 = vset.pattern.permute.xlu0 0
        %321 = vperm.xlu0 %320, %v299
        %v322 = vpop.permute.xlu0 %321
        %325 = vset.pattern.permute.xlu0 0
        %326 = vperm.xlu0 %325, %v300
        %v327 = vpop.permute.xlu0 %326
        %330 = vset.pattern.permute.xlu0 0
        %331 = vperm.xlu0 %330, %v301
        %v332 = vpop.permute.xlu0 %331
        %335 = vset.pattern.permute.xlu0 0
        %336 = vperm.xlu0 %335, %v302
        %v337 = vpop.permute.xlu0 %336
        %340 = vset.pattern.permute.xlu0 0
        %341 = vperm.xlu0 %340, %v303
        %v342 = vpop.permute.xlu0 %341
        %v352 = vunpack.c.l.b16 %v288
        %v353 = vunpack.c.l.b16 %v289
        %v354 = vunpack.c.l.b16 %v290
        %v355 = vunpack.c.l.b16 %v291
        %v356 = vunpack.c.l.b16 %v292
        %v357 = vunpack.c.l.b16 %v293
        %v358 = vunpack.c.l.b16 %v294
        %v359 = vunpack.c.l.b16 %v295
        %v360 = vpack.c.b16 %v353, %v352
        %v361 = vpack.c.b16 %v355, %v354
        %v362 = vpack.c.b16 %v357, %v356
        %v363 = vpack.c.b16 %v359, %v358
        %vm364 = vcmask 31744
        %v366 = vsel %vm364, %v360, 0
        %v369 = vsel %vm364, %v361, 0
        %v372 = vsel %vm364, %v362, 0
        %v375 = vsel %vm364, %v363, 0
        %vm377 = vcmask 1041408
        %v379 = vsel %vm377, %v286, 0
        %v382 = vsel %vm377, %v287, 0
        %384 = vmatprep.subr.bf16.mxu0 %v382
        %385 = vmatpush1.bf16.msra.mxu0 %v379
        %386 = vmatprep.subr.bf16.mxu0 0
        %387 = vmatpush1.bf16.msra.mxu0 0
        %388 = vmatprep.subr.bf16.mxu0 0
        %389 = vmatpush1.bf16.msra.mxu0 0
        %390 = vmatprep.subr.bf16.mxu0 0
        %391 = vmatpush1.bf16.msra.mxu0 0
        %392 = vmatprep.subr.bf16.mxu0 0
        %393 = vmatpush1.bf16.msra.mxu0 0
        %394 = vmatprep.subr.bf16.mxu0 0
        %395 = vmatpush1.bf16.msra.mxu0 0
        %396 = vmatprep.subr.bf16.mxu0 0
        %397 = vmatpush1.bf16.msra.mxu0 0
        %398 = vmatprep.subr.bf16.mxu0 0
        %399 = vmatpush1.bf16.msra.mxu0 0
        %400 = vmatprep.subr.bf16.mxu0 0
        %401 = vmatpush1.bf16.msra.mxu0 0
        %402 = vmatprep.subr.bf16.mxu0 0
        %403 = vmatpush1.bf16.msra.mxu0 0
        %404 = vmatprep.subr.bf16.mxu0 0
        %405 = vmatpush1.bf16.msra.mxu0 0
        %406 = vmatprep.subr.bf16.mxu0 0
        %407 = vmatpush1.bf16.msra.mxu0 0
        %408 = vmatprep.subr.bf16.mxu0 0
        %409 = vmatpush1.bf16.msra.mxu0 0
        %410 = vmatprep.subr.bf16.mxu0 0
        %411 = vmatpush1.bf16.msra.mxu0 0
        %412 = vmatprep.subr.bf16.mxu0 0
        %413 = vmatpush1.bf16.msra.mxu0 0
        %414 = vmatprep.subr.bf16.mxu0 0
        %415 = vmatpush1.bf16.msra.mxu0 0
        %416 = vmatprep.mubr.bf16.mxu0 0
        %417 = vmatmul.mubr.bf16.gmra.mrb[0].mxu0 %v366
        %v418 = vpop.f32.mrb[0].mxu0
        %v419 = vadd.f32 %v307, %v418
        %v420 = vpop.f32.mrb[0].mxu0
        %v421 = vadd.f32 %v307, %v420
        %v422 = vpop.f32.mrb[0].mxu0
        %v423 = vadd.f32 %v312, %v422
        %v424 = vpop.f32.mrb[0].mxu0
        %v425 = vadd.f32 %v312, %v424
        %426 = vmatprep.mubr.bf16.mxu0 0
        %427 = vmatmul.mubr.bf16.gmra.mrb[0].mxu0 %v369
        %v428 = vpop.f32.mrb[0].mxu0
        %v429 = vadd.f32 %v317, %v428
        %v430 = vpop.f32.mrb[0].mxu0
        %v431 = vadd.f32 %v317, %v430
        %v432 = vpop.f32.mrb[0].mxu0
        %v433 = vadd.f32 %v322, %v432
        %v434 = vpop.f32.mrb[0].mxu0
        %v435 = vadd.f32 %v322, %v434
        %436 = vmatprep.mubr.bf16.mxu0 0
        %437 = vmatmul.mubr.bf16.gmra.mrb[0].mxu0 %v372
        %v438 = vpop.f32.mrb[0].mxu0
        %v439 = vadd.f32 %v327, %v438
        %v440 = vpop.f32.mrb[0].mxu0
        %v441 = vadd.f32 %v327, %v440
        %v442 = vpop.f32.mrb[0].mxu0
        %v443 = vadd.f32 %v332, %v442
        %v444 = vpop.f32.mrb[0].mxu0
        %v445 = vadd.f32 %v332, %v444
        %446 = vmatprep.mubr.bf16.mxu0 0
        %447 = vmatmul.mubr.bf16.gmra.mrb[0].mxu0 %v375
        %v448 = vpop.f32.mrb[0].mxu0
        %v449 = vadd.f32 %v337, %v448
        %v450 = vpop.f32.mrb[0].mxu0
        %v451 = vadd.f32 %v337, %v450
        %v452 = vpop.f32.mrb[0].mxu0
        %v453 = vadd.f32 %v342, %v452
        %v454 = vpop.f32.mrb[0].mxu0
        %v455 = vadd.f32 %v342, %v454
        %456 = vdwg.mxu0
        %v457 = vmul.f32 %v419, 0.2
        %v458 = vmul.f32 %v421, 0.2
        %v459 = vmul.f32 %v423, 0.2
        %v460 = vmul.f32 %v425, 0.2
        %v461 = vmul.f32 %v429, 0.2
        %v462 = vmul.f32 %v431, 0.2
        %v463 = vmul.f32 %v433, 0.2
        %v464 = vmul.f32 %v435, 0.2
        %v465 = vmul.f32 %v439, 0.2
        %v466 = vmul.f32 %v441, 0.2
        %v467 = vmul.f32 %v443, 0.2
        %v468 = vmul.f32 %v445, 0.2
        %v469 = vmul.f32 %v449, 0.2
        %v470 = vmul.f32 %v451, 0.2
        %v471 = vmul.f32 %v453, 0.2
        %v472 = vmul.f32 %v455, 0.2
        %v473 = vmax.f32 %v419, %v457
        %v474 = vmax.f32 %v421, %v458
        %v475 = vmax.f32 %v423, %v459
        %v476 = vmax.f32 %v425, %v460
        %v477 = vmax.f32 %v429, %v461
        %v478 = vmax.f32 %v431, %v462
        %v479 = vmax.f32 %v433, %v463
        %v480 = vmax.f32 %v435, %v464
        %v481 = vmax.f32 %v439, %v465
        %v482 = vmax.f32 %v441, %v466
        %v483 = vmax.f32 %v443, %v467
        %v484 = vmax.f32 %v445, %v468
        %v485 = vmax.f32 %v449, %v469
        %v486 = vmax.f32 %v451, %v470
        %v487 = vmax.f32 %v453, %v471
        %v488 = vmax.f32 %v455, %v472
        %v489 = vld [vmem:[%s3] sm:$0xf]
        %v490 = vld [vmem:[%s3 + $0x4] sm:$0xf]
        %v491 = vld [vmem:[%s3 + $0x8] sm:$0xf]
        %v492 = vld [vmem:[%s3 + $0xc] sm:$0xf]
        %v493 = vld [vmem:[%s3 + $0x10] sm:$0xf]
        %v494 = vld [vmem:[%s3 + $0x14] sm:$0xf]
        %v495 = vld [vmem:[%s3 + $0x18] sm:$0xf]
        %v496 = vld [vmem:[%s3 + $0x1c] sm:$0xf]
        %v497 = vld [vmem:[%s3 + $0x20] sm:$0xf]
        %v498 = vld [vmem:[%s3 + $0x24] sm:$0xf]
        %v499 = vld [vmem:[%s3 + $0x28] sm:$0xf]
        %v500 = vld [vmem:[%s3 + $0x2c] sm:$0xf]
        %v501 = vld [vmem:[%s3 + $0x30] sm:$0xf]
        %v502 = vld [vmem:[%s3 + $0x34] sm:$0xf]
        %v503 = vld [vmem:[%s3 + $0x38] sm:$0xf]
        %v504 = vld [vmem:[%s3 + $0x3c] sm:$0xf]
        %v505 = vpack.c.bf16 %v475, %v473
        %v506 = vpack.c.bf16 %v476, %v474
        %v507 = vpack.c.bf16 %v479, %v477
        %v508 = vpack.c.bf16 %v480, %v478
        %v509 = vpack.c.bf16 %v483, %v481
        %v510 = vpack.c.bf16 %v484, %v482
        %v511 = vpack.c.bf16 %v487, %v485
        %v512 = vpack.c.bf16 %v488, %v486
        %v513 = vld [vmem:[%s4] sm:$0xff]
        %v514 = vld [vmem:[%s4 + $0x8] sm:$0xff]
        %v515 = vld [vmem:[%s4 + $0x10] sm:$0xff]
        %v516 = vld [vmem:[%s4 + $0x18] sm:$0xff]
        %v517 = vld [vmem:[%s4 + $0x20] sm:$0xff]
        %v518 = vld [vmem:[%s4 + $0x28] sm:$0xff]
        %v519 = vld [vmem:[%s4 + $0x30] sm:$0xff]
        %v520 = vld [vmem:[%s4 + $0x38] sm:$0xff]
        %v521 = vld [vmem:[%s4 + $0x40] sm:$0xff]
        %v522 = vld [vmem:[%s4 + $0x48] sm:$0xff]
        %v523 = vld [vmem:[%s4 + $0x50] sm:$0xff]
        %v524 = vld [vmem:[%s4 + $0x58] sm:$0xff]
        %v525 = vld [vmem:[%s4 + $0x60] sm:$0xff]
        %v526 = vld [vmem:[%s4 + $0x68] sm:$0xff]
        %v527 = vld [vmem:[%s4 + $0x70] sm:$0xff]
        %v528 = vld [vmem:[%s4 + $0x78] sm:$0xff]
        %530 = vset.pattern.permute.xlu0 0
        %531 = vperm.xlu0 %530, %v513
        %v532 = vpop.permute.xlu0 %531
        %535 = vset.pattern.permute.xlu0 0
        %536 = vperm.xlu0 %535, %v514
        %v537 = vpop.permute.xlu0 %536
        %540 = vset.pattern.permute.xlu0 0
        %541 = vperm.xlu0 %540, %v515
        %v542 = vpop.permute.xlu0 %541
        %545 = vset.pattern.permute.xlu0 0
        %546 = vperm.xlu0 %545, %v516
        %v547 = vpop.permute.xlu0 %546
        %550 = vset.pattern.permute.xlu0 0
        %551 = vperm.xlu0 %550, %v517
        %v552 = vpop.permute.xlu0 %551
        %555 = vset.pattern.permute.xlu0 0
        %556 = vperm.xlu0 %555, %v518
        %v557 = vpop.permute.xlu0 %556
        %560 = vset.pattern.permute.xlu0 0
        %561 = vperm.xlu0 %560, %v519
        %v562 = vpop.permute.xlu0 %561
        %565 = vset.pattern.permute.xlu0 0
        %566 = vperm.xlu0 %565, %v520
        %v567 = vpop.permute.xlu0 %566
        %570 = vset.pattern.permute.xlu0 0
        %571 = vperm.xlu0 %570, %v521
        %v572 = vpop.permute.xlu0 %571
        %575 = vset.pattern.permute.xlu0 0
        %576 = vperm.xlu0 %575, %v522
        %v577 = vpop.permute.xlu0 %576
        %580 = vset.pattern.permute.xlu0 0
        %581 = vperm.xlu0 %580, %v523
        %v582 = vpop.permute.xlu0 %581
        %585 = vset.pattern.permute.xlu0 0
        %586 = vperm.xlu0 %585, %v524
        %v587 = vpop.permute.xlu0 %586
        %590 = vset.pattern.permute.xlu0 0
        %591 = vperm.xlu0 %590, %v525
        %v592 = vpop.permute.xlu0 %591
        %595 = vset.pattern.permute.xlu0 0
        %596 = vperm.xlu0 %595, %v526
        %v597 = vpop.permute.xlu0 %596
        %600 = vset.pattern.permute.xlu0 0
        %601 = vperm.xlu0 %600, %v527
        %v602 = vpop.permute.xlu0 %601
        %605 = vset.pattern.permute.xlu0 0
        %606 = vperm.xlu0 %605, %v528
        %v607 = vpop.permute.xlu0 %606
        %v625 = vunpack.c.l.b16 %v489
        %v626 = vunpack.c.l.b16 %v490
        %v627 = vunpack.c.l.b16 %v491
        %v628 = vunpack.c.l.b16 %v492
        %v629 = vunpack.c.l.b16 %v493
        %v630 = vunpack.c.l.b16 %v494
        %v631 = vunpack.c.l.b16 %v495
        %v632 = vunpack.c.l.b16 %v496
        %v633 = vunpack.c.l.b16 %v497
        %v634 = vunpack.c.l.b16 %v498
        %v635 = vunpack.c.l.b16 %v499
        %v636 = vunpack.c.l.b16 %v500
        %v637 = vunpack.c.l.b16 %v501
        %v638 = vunpack.c.l.b16 %v502
        %v639 = vunpack.c.l.b16 %v503
        %v640 = vunpack.c.l.b16 %v504
        %v641 = vpack.c.b16 %v626, %v625
        %v642 = vpack.c.b16 %v628, %v627
        %v643 = vpack.c.b16 %v630, %v629
        %v644 = vpack.c.b16 %v632, %v631
        %v645 = vpack.c.b16 %v634, %v633
        %v646 = vpack.c.b16 %v636, %v635
        %v647 = vpack.c.b16 %v638, %v637
        %v648 = vpack.c.b16 %v640, %v639
        %vm649 = vcmask 523264
        %v651 = vsel %vm649, %v641, 0
        %v654 = vsel %vm649, %v642, 0
        %v657 = vsel %vm649, %v643, 0
        %v660 = vsel %vm649, %v644, 0
        %v663 = vsel %vm649, %v645, 0
        %v666 = vsel %vm649, %v646, 0
        %v669 = vsel %vm649, %v647, 0
        %v672 = vsel %vm649, %v648, 0
        %674 = vmatprep.subr.bf16.mxu0 %v506
        %675 = vmatpush1.bf16.msra.mxu0 %v505
        %676 = vmatprep.subr.bf16.mxu0 %v508
        %677 = vmatpush1.bf16.msra.mxu0 %v507
        %678 = vmatprep.subr.bf16.mxu0 %v510
        %679 = vmatpush1.bf16.msra.mxu0 %v509
        %680 = vmatprep.subr.bf16.mxu0 %v512
        %681 = vmatpush1.bf16.msra.mxu0 %v511
        %682 = vmatprep.subr.bf16.mxu0 0
        %683 = vmatpush1.bf16.msra.mxu0 0
        %684 = vmatprep.subr.bf16.mxu0 0
        %685 = vmatpush1.bf16.msra.mxu0 0
        %686 = vmatprep.subr.bf16.mxu0 0
        %687 = vmatpush1.bf16.msra.mxu0 0
        %688 = vmatprep.subr.bf16.mxu0 0
        %689 = vmatpush1.bf16.msra.mxu0 0
        %690 = vmatprep.subr.bf16.mxu0 0
        %691 = vmatpush1.bf16.msra.mxu0 0
        %692 = vmatprep.subr.bf16.mxu0 0
        %693 = vmatpush1.bf16.msra.mxu0 0
        %694 = vmatprep.subr.bf16.mxu0 0
        %695 = vmatpush1.bf16.msra.mxu0 0
        %696 = vmatprep.subr.bf16.mxu0 0
        %697 = vmatpush1.bf16.msra.mxu0 0
        %698 = vmatprep.subr.bf16.mxu0 0
        %699 = vmatpush1.bf16.msra.mxu0 0
        %700 = vmatprep.subr.bf16.mxu0 0
        %701 = vmatpush1.bf16.msra.mxu0 0
        %702 = vmatprep.subr.bf16.mxu0 0
        %703 = vmatpush1.bf16.msra.mxu0 0
        %704 = vmatprep.subr.bf16.mxu0 0
        %705 = vmatpush1.bf16.msra.mxu0 0
        %706 = vmatprep.mubr.bf16.mxu0 0
        %707 = vmatmul.mubr.bf16.gmra.mrb[0].mxu0 %v651
        %v708 = vpop.f32.mrb[0].mxu0
        %v709 = vadd.f32 %v532, %v708
        %v710 = vpop.f32.mrb[0].mxu0
        %v711 = vadd.f32 %v532, %v710
        %v712 = vpop.f32.mrb[0].mxu0
        %v713 = vadd.f32 %v537, %v712
        %v714 = vpop.f32.mrb[0].mxu0
        %v715 = vadd.f32 %v537, %v714
        %716 = vmatprep.mubr.bf16.mxu0 0
        %717 = vmatmul.mubr.bf16.gmra.mrb[0].mxu0 %v654
        %v718 = vpop.f32.mrb[0].mxu0
        %v719 = vadd.f32 %v542, %v718
        %v720 = vpop.f32.mrb[0].mxu0
        %v721 = vadd.f32 %v542, %v720
        %v722 = vpop.f32.mrb[0].mxu0
        %v723 = vadd.f32 %v547, %v722
        %v724 = vpop.f32.mrb[0].mxu0
        %v725 = vadd.f32 %v547, %v724
        %726 = vmatprep.mubr.bf16.mxu0 0
        %727 = vmatmul.mubr.bf16.gmra.mrb[0].mxu0 %v657
        %v728 = vpop.f32.mrb[0].mxu0
        %v729 = vadd.f32 %v552, %v728
        %v730 = vpop.f32.mrb[0].mxu0
        %v731 = vadd.f32 %v552, %v730
        %v732 = vpop.f32.mrb[0].mxu0
        %v733 = vadd.f32 %v557, %v732
        %v734 = vpop.f32.mrb[0].mxu0
        %v735 = vadd.f32 %v557, %v734
        %736 = vmatprep.mubr.bf16.mxu0 0
        %737 = vmatmul.mubr.bf16.gmra.mrb[0].mxu0 %v660
        %v738 = vpop.f32.mrb[0].mxu0
        %v739 = vadd.f32 %v562, %v738
        %v740 = vpop.f32.mrb[0].mxu0
        %v741 = vadd.f32 %v562, %v740
        %v742 = vpop.f32.mrb[0].mxu0
        %v743 = vadd.f32 %v567, %v742
        %v744 = vpop.f32.mrb[0].mxu0
        %v745 = vadd.f32 %v567, %v744
        %746 = vmatprep.mubr.bf16.mxu0 0
        %747 = vmatmul.mubr.bf16.gmra.mrb[0].mxu0 %v663
        %v748 = vpop.f32.mrb[0].mxu0
        %v749 = vadd.f32 %v572, %v748
        %v750 = vpop.f32.mrb[0].mxu0
        %v751 = vadd.f32 %v572, %v750
        %v752 = vpop.f32.mrb[0].mxu0
        %v753 = vadd.f32 %v577, %v752
        %v754 = vpop.f32.mrb[0].mxu0
        %v755 = vadd.f32 %v577, %v754
        %756 = vmatprep.mubr.bf16.mxu0 0
        %757 = vmatmul.mubr.bf16.gmra.mrb[0].mxu0 %v666
        %v758 = vpop.f32.mrb[0].mxu0
        %v759 = vadd.f32 %v582, %v758
        %v760 = vpop.f32.mrb[0].mxu0
        %v761 = vadd.f32 %v582, %v760
        %v762 = vpop.f32.mrb[0].mxu0
        %v763 = vadd.f32 %v587, %v762
        %v764 = vpop.f32.mrb[0].mxu0
        %v765 = vadd.f32 %v587, %v764
        %766 = vmatprep.mubr.bf16.mxu0 0
        %767 = vmatmul.mubr.bf16.gmra.mrb[0].mxu0 %v669
        %v768 = vpop.f32.mrb[0].mxu0
        %v769 = vadd.f32 %v592, %v768
        %v770 = vpop.f32.mrb[0].mxu0
        %v771 = vadd.f32 %v592, %v770
        %v772 = vpop.f32.mrb[0].mxu0
        %v773 = vadd.f32 %v597, %v772
        %v774 = vpop.f32.mrb[0].mxu0
        %v775 = vadd.f32 %v597, %v774
        %776 = vmatprep.mubr.bf16.mxu0 0
        %777 = vmatmul.mubr.bf16.gmra.mrb[0].mxu0 %v672
        %v778 = vpop.f32.mrb[0].mxu0
        %v779 = vadd.f32 %v602, %v778
        %v780 = vpop.f32.mrb[0].mxu0
        %v781 = vadd.f32 %v602, %v780
        %v782 = vpop.f32.mrb[0].mxu0
        %v783 = vadd.f32 %v607, %v782
        %v784 = vpop.f32.mrb[0].mxu0
        %v785 = vadd.f32 %v607, %v784
        %786 = vdwg.mxu0
        %v787 = vmul.f32 %v709, 0.2
        %v788 = vmul.f32 %v711, 0.2
        %v789 = vmul.f32 %v713, 0.2
        %v790 = vmul.f32 %v715, 0.2
        %v791 = vmul.f32 %v719, 0.2
        %v792 = vmul.f32 %v721, 0.2
        %v793 = vmul.f32 %v723, 0.2
        %v794 = vmul.f32 %v725, 0.2
        %v795 = vmul.f32 %v729, 0.2
        %v796 = vmul.f32 %v731, 0.2
        %v797 = vmul.f32 %v733, 0.2
        %v798 = vmul.f32 %v735, 0.2
        %v799 = vmul.f32 %v739, 0.2
        %v800 = vmul.f32 %v741, 0.2
        %v801 = vmul.f32 %v743, 0.2
        %v802 = vmul.f32 %v745, 0.2
        %v803 = vmul.f32 %v749, 0.2
        %v804 = vmul.f32 %v751, 0.2
        %v805 = vmul.f32 %v753, 0.2
        %v806 = vmul.f32 %v755, 0.2
        %v807 = vmul.f32 %v759, 0.2
        %v808 = vmul.f32 %v761, 0.2
        %v809 = vmul.f32 %v763, 0.2
        %v810 = vmul.f32 %v765, 0.2
        %v811 = vmul.f32 %v769, 0.2
        %v812 = vmul.f32 %v771, 0.2
        %v813 = vmul.f32 %v773, 0.2
        %v814 = vmul.f32 %v775, 0.2
        %v815 = vmul.f32 %v779, 0.2
        %v816 = vmul.f32 %v781, 0.2
        %v817 = vmul.f32 %v783, 0.2
        %v818 = vmul.f32 %v785, 0.2
        %v819 = vmax.f32 %v709, %v787
        %v820 = vmax.f32 %v711, %v788
        %v821 = vmax.f32 %v713, %v789
        %v822 = vmax.f32 %v715, %v790
        %v823 = vmax.f32 %v719, %v791
        %v824 = vmax.f32 %v721, %v792
        %v825 = vmax.f32 %v723, %v793
        %v826 = vmax.f32 %v725, %v794
        %v827 = vmax.f32 %v729, %v795
        %v828 = vmax.f32 %v731, %v796
        %v829 = vmax.f32 %v733, %v797
        %v830 = vmax.f32 %v735, %v798
        %v831 = vmax.f32 %v739, %v799
        %v832 = vmax.f32 %v741, %v800
        %v833 = vmax.f32 %v743, %v801
        %v834 = vmax.f32 %v745, %v802
        %v835 = vmax.f32 %v749, %v803
        %v836 = vmax.f32 %v751, %v804
        %v837 = vmax.f32 %v753, %v805
        %v838 = vmax.f32 %v755, %v806
        %v839 = vmax.f32 %v759, %v807
        %v840 = vmax.f32 %v761, %v808
        %v841 = vmax.f32 %v763, %v809
        %v842 = vmax.f32 %v765, %v810
        %v843 = vmax.f32 %v769, %v811
        %v844 = vmax.f32 %v771, %v812
        %v845 = vmax.f32 %v773, %v813
        %v846 = vmax.f32 %v775, %v814
        %v847 = vmax.f32 %v779, %v815
        %v848 = vmax.f32 %v781, %v816
        %v849 = vmax.f32 %v783, %v817
        %v850 = vmax.f32 %v785, %v818
        %v851 = vld [vmem:[%s5] sm:$0x1]
        %v852 = vpack.c.bf16 %v821, %v819
        %v853 = vpack.c.bf16 %v822, %v820
        %v854 = vpack.c.bf16 %v825, %v823
        %v855 = vpack.c.bf16 %v826, %v824
        %v856 = vpack.c.bf16 %v829, %v827
        %v857 = vpack.c.bf16 %v830, %v828
        %v858 = vpack.c.bf16 %v833, %v831
        %v859 = vpack.c.bf16 %v834, %v832
        %v860 = vpack.c.bf16 %v837, %v835
        %v861 = vpack.c.bf16 %v838, %v836
        %v862 = vpack.c.bf16 %v841, %v839
        %v863 = vpack.c.bf16 %v842, %v840
        %v864 = vpack.c.bf16 %v845, %v843
        %v865 = vpack.c.bf16 %v846, %v844
        %v866 = vpack.c.bf16 %v849, %v847
        %v867 = vpack.c.bf16 %v850, %v848
        %868 = vmatprep.subr.bf16.mxu0 %v853
        %869 = vmatpush1.bf16.msra.mxu0 %v852
        %870 = vmatprep.subr.bf16.mxu0 %v855
        %871 = vmatpush1.bf16.msra.mxu0 %v854
        %872 = vmatprep.subr.bf16.mxu0 %v857
        %873 = vmatpush1.bf16.msra.mxu0 %v856
        %874 = vmatprep.subr.bf16.mxu0 %v859
        %875 = vmatpush1.bf16.msra.mxu0 %v858
        %876 = vmatprep.subr.bf16.mxu0 %v861
        %877 = vmatpush1.bf16.msra.mxu0 %v860
        %878 = vmatprep.subr.bf16.mxu0 %v863
        %879 = vmatpush1.bf16.msra.mxu0 %v862
        %880 = vmatprep.subr.bf16.mxu0 %v865
        %881 = vmatpush1.bf16.msra.mxu0 %v864
        %882 = vmatprep.subr.bf16.mxu0 %v867
        %883 = vmatpush1.bf16.msra.mxu0 %v866
        %884 = vmatprep.subr.bf16.mxu0 0
        %885 = vmatpush1.bf16.msra.mxu0 0
        %886 = vmatprep.subr.bf16.mxu0 0
        %887 = vmatpush1.bf16.msra.mxu0 0
        %888 = vmatprep.subr.bf16.mxu0 0
        %889 = vmatpush1.bf16.msra.mxu0 0
        %890 = vmatprep.subr.bf16.mxu0 0
        %891 = vmatpush1.bf16.msra.mxu0 0
        %892 = vmatprep.subr.bf16.mxu0 0
        %893 = vmatpush1.bf16.msra.mxu0 0
        %894 = vmatprep.subr.bf16.mxu0 0
        %895 = vmatpush1.bf16.msra.mxu0 0
        %896 = vmatprep.subr.bf16.mxu0 0
        %897 = vmatpush1.bf16.msra.mxu0 0
        %898 = vmatprep.subr.bf16.mxu0 0
        %899 = vmatpush1.bf16.msra.mxu0 0
        %900 = vmatprep.mubr.bf16.mxu0 0
        %901 = vmatmul.mubr.bf16.gmra.mrb[0].mxu0 %v851
        %v902 = vpop.f32.mrb[0].mxu0
        %v903 = vadd.f32 0.0, %v902
        %v904 = vpop.f32.mrb[0].mxu0
        %v905 = vadd.f32 0.0, %v904
        %v906 = vpop.f32.mrb[0].mxu0
        %v907 = vpop.f32.mrb[0].mxu0
        %908 = vdwg.mxu0
        %v911 = vcombine.low %v903, %v905
        %v913 = vunpack.c.l.s4 1966171168
        %v914 = vunpack.c.0.s8 %v913
        %v915 = vlaneseq
        %v916 = vshrl.u32 %v915, 7
        %v917 = vsub.s32 %v914, %v916
        %v918 = vrot.slane %v911, %v917
        %v920 = vunpack.c.l.s4 1966171168
        %v921 = vunpack.c.0.s8 %v920
        %v922 = vlaneseq
        %v923 = vshrl.u32 %v922, 7
        %v924 = vsub.s32 %v921, %v923
        %v925 = vrot.slane %v918, %v924
        %v927 = vlaneseq
        %vm928 = vcmp.ge.s32.totalorder %v927, 0
        %vm929 = vcmp.lt.s32.totalorder %v927, 256
        %vm930 = vmand %vm928, %vm929
        %931 = vst.msk [vmem:[%s269] sm:$0x3] %vm930, %v925
        %s932 = sand.u32 %s175, 1
        %s933 = scalar_lea.sflag [#allocation3], %s932
        %s934 = sand.u32 %s175, 1
        %s935 = smul.addr %s934, 2
        %s936 = scalar_lea.vmem [#allocation2], %s935
        // Predicated region
        $region45: #{tpu_custom_call.1} parent=43 // pred_check
          %p937 = pneg %p185
        $region46: #{tpu_custom_call.1} parent=43 // pred_check_branch
          %939 = sbr.rel (%p937) target = $region48
        $region47: #{tpu_custom_call.1} parent=43 // pred_region
          %s940 = smul.u32 2, %s25
          %s942 = ssub.s32 32, 32
          %943 = vsyncadd %s933, %s942
          %s944 = smul.addr %s24, 2
          %s945 = sadd.s32 %s940, %s944
          %s946 = smul.addr %s945, 16
          %s947 = scalar_lea.hbm %s6, %s946
          %s949 = sshll.u32 %s936, 4
          %s950 = int_to_ptr.vmem [resolvable:$true] %s949
          %952 = dma.vmem_to_hbm [thread:$0]  %s950, 32, %s947, %s933
        $region48: #{tpu_custom_call.1} parent=43 // pred_fallthru
          _
      $region44: #{tpu_custom_call.1} parent=5 // pred_fallthru
        _
      %p953 = scmp.le.s32.totalorder 2, %s15
      // Predicated region
      $region49: #{tpu_custom_call.1} parent=5 // pred_check
        %p954 = pneg %p953
      $region50: #{tpu_custom_call.1} parent=5 // pred_check_branch
        %956 = sbr.rel (%p954) target = $region52
      $region51: #{tpu_custom_call.1} parent=5 // pred_region
        %s957 = ssub.s32 %s15, 2
        // Predicated region
        $region53: #{tpu_custom_call.1} parent=51 // pred_check
          %p958 = pneg %p191
        $region54: #{tpu_custom_call.1} parent=51 // pred_check_branch
          %960 = sbr.rel (%p958) target = $region56
        $region55: #{tpu_custom_call.1} parent=51 // pred_region
          %s961 = sand.u32 %s176, 1
          %s962 = scalar_lea.sflag [#allocation3], %s961
          %s963 = sand.u32 %s176, 1
          %s964 = smul.addr %s963, 2
          %s965 = scalar_lea.vmem [#allocation2], %s964
          %966 = dma.done %s962, 32
        $region56: #{tpu_custom_call.1} parent=51 // pred_fallthru
          _
      $region52: #{tpu_custom_call.1} parent=5 // pred_fallthru
        _
    $region6: #{tpu_custom_call.1} parent=1 // loop_footer
      %s19 = sadd.s32 1, %s15
    $region7: #{tpu_custom_call.1} parent=1 // loop_footer_branch
      %14 = sbr.rel target = $region3
    $region8: #{tpu_custom_call.1} parent=1 // loop_exit
      _
    %967 = vsyncpa [#allocation3], 1
    %s968 = scalar_lea.sflag [#allocation3], 1
    %969 = vsyncpa %s968, 1

</llo_original>
